<compile_context>
chip_gen: v7x
topology: tpu7x:2x2x1
jax: 0.10.0
libtpu: 0.0.40
codegen_flags: <defaults>
</compile_context>

<pallas_src>
import functools

import jax
import jax.numpy as jnp
from jax.experimental import pallas as pl
from jax.experimental.pallas import tpu as pltpu


def _round_up(x, m):
    return ((x + m - 1) // m) * m


def _vmem_capacity_bytes():
    try:
        return int(pltpu.get_tpu_info().vmem_capacity_bytes)
    except Exception:
        try:
            kind = jax.devices()[0].device_kind.lower()
        except Exception:
            kind = ""
        return (64 << 20) if "v7" in kind else (128 << 20)


def _default_use_bf16_exp():
    # bf16 EUP exists on v6e / v7x; keep f32 exp on v5e and unknown chips.
    try:
        kind = jax.devices()[0].device_kind.lower()
    except Exception:
        return False
    return ("v6" in kind) or ("v7" in kind)


def _contrastive_loss_kernel(feat_ref, out_ref, *, inv_temp, n_valid, n_rows_pad, tq,
                             exp_dtype, precision, mask_rows):
    f32 = jnp.float32
    row0 = pl.multiple_of(pl.program_id(0) * tq, 8)

    keys = feat_ref[...]                        # (n_rows_pad, d) pre-normalized keys
    q = feat_ref[pl.ds(row0, tq), :]            # (tq, d) query rows (same resident block)

    # Raw cosine-similarity tile (tq, n_rows_pad): MXU, f32 accumulation.
    raw = jax.lax.dot_general(q, keys, (((1,), (1,)), ((), ())),
                              preferred_element_type=f32, precision=precision)

    # Diagonal raw[i, i] per query row, from the SAME rounded operands (VPU, cheap: d
    # wide, not n wide) -> operand rounding cancels in (raw - diag).
    qf = q.astype(f32)
    diag = jnp.sum(qf * qf, axis=1, keepdims=True)          # (tq, 1)

    # loss_i = logsumexp_j(raw_ij/temp) - raw_ii/temp = log( sum_j exp((raw_ij-raw_ii)/temp) )
    # diag is the row max for unit-norm rows, so no extra row-max pass; exponent bounded.
    shifted = (raw - diag) * inv_temp                        # (tq, n_rows_pad)
    p = jnp.exp(shifted.astype(exp_dtype)).astype(f32)
    row_sum = jnp.sum(p, axis=1, keepdims=True)              # (tq, 1)

    n_pad_cols = n_rows_pad - n_valid
    if n_pad_cols > 0:
        # Padded key rows are exact zeros -> raw == 0 exactly -> each contributes
        # exp(-inv_temp * diag).  Remove analytically, using the SAME exp path so the
        # correction matches the bf16-exp terms bit-for-bit.
        corr = jnp.exp((-inv_temp * diag).astype(exp_dtype)).astype(f32)
        row_sum = row_sum - jnp.float32(n_pad_cols) * corr

    per_row = jnp.log(row_sum)                               # (tq, 1)

    if mask_rows:
        # Drop padded / overhanging query rows from this tile's partial sum.
        row_ids = row0 + jax.lax.broadcasted_iota(jnp.int32, (tq, 1), 0)
        per_row = jnp.where(row_ids < n_valid, per_row, 0.0)

    out_ref[0, 0] = jnp.sum(per_row)


def contrastive_loss(features, temperature=0.05, *, block_rows=256,
                     use_bf16_matmul=True, use_bf16_exp=None):
    features = jnp.asarray(features)
    n, d = features.shape

    if use_bf16_exp is None:
        use_bf16_exp = _default_use_bf16_exp()
    exp_dtype = jnp.bfloat16 if use_bf16_exp else jnp.float32
    mxu_dtype = jnp.bfloat16 if use_bf16_matmul else jnp.float32
    precision = None if use_bf16_matmul else jax.lax.Precision.HIGHEST
    itemsize = 2 if use_bf16_matmul else 4
    exp_item = 2 if use_bf16_exp else 4

    # --- Hoisted normalization (F.normalize dim=1) + MXU dtype cast, once, in XLA. ---
    f32feat = features.astype(jnp.float32)
    norm = jnp.sqrt(jnp.sum(f32feat * f32feat, axis=1, keepdims=True))
    fn = (f32feat / jnp.maximum(norm, 1e-12)).astype(mxu_dtype)

    # --- Tile sizing: row tile tq (multiple of 8), keys padded to >=128-multiple rows,
    #     auto-shrink tq if the estimated VMEM footprint exceeds the chip budget. ---
    budget = int(0.85 * _vmem_capacity_bytes())
    tq = max(8, _round_up(min(block_rows, n), 8))
    while True:
        num_tiles = -(-n // tq)
        n_rows_pad = max(_round_up(n, 128), num_tiles * tq)
        est = (n_rows_pad * d * itemsize                       # resident keys (1 buffer)
               + tq * n_rows_pad * (12 + exp_item)             # raw/shifted/exp temporaries
               + 6 * tq * d * 4                                # query f32 copies, diag, ...
               + (2 << 20))
        if est <= budget or tq <= 8:
            break
        tq = max(8, _round_up(tq // 2, 8))
    vmem_limit = int(min(max(est + (4 << 20), 32 << 20), budget))

    # Pad AFTER normalization/cast so padded rows are exact zeros (the analytic
    # padded-column correction in the kernel depends on this).
    if n_rows_pad != n:
        fn = jnp.concatenate(
            [fn, jnp.zeros((n_rows_pad - n, d), dtype=fn.dtype)], axis=0)

    kernel = functools.partial(
        _contrastive_loss_kernel,
        inv_temp=float(1.0 / temperature),
        n_valid=n, n_rows_pad=n_rows_pad, tq=tq,
        exp_dtype=exp_dtype, precision=precision,
        mask_rows=(num_tiles * tq > n))

    # Resident key block: constant index, single-buffered (nothing to pipeline).
    try:
        key_spec = pl.BlockSpec((n_rows_pad, d), lambda i: (0, 0),
                                pipeline_mode=pl.Buffered(1))
    except TypeError:  # pragma: no cover - older BlockSpec without pipeline_mode kwarg
        key_spec = pl.BlockSpec((n_rows_pad, d), lambda i: (0, 0))

    partials = pl.pallas_call(
        kernel,
        out_shape=jax.ShapeDtypeStruct((num_tiles, 1), jnp.float32),
        grid=(num_tiles,),
        in_specs=[key_spec],
        out_specs=pl.BlockSpec((1, 1), lambda i: (i, 0),
                               memory_space=pltpu.MemorySpace.SMEM),
        compiler_params=pltpu.CompilerParams(
            dimension_semantics=("parallel",),        # megacore sharding on v7x
            vmem_limit_bytes=vmem_limit),
    )(fn)

    return jnp.sum(partials[:, 0])


def _reference_loss(features, temperature=0.05):
    f = features.astype(jnp.float32)
    fn = f / jnp.maximum(jnp.linalg.norm(f, axis=1, keepdims=True), 1e-12)
    logits = jnp.dot(fn, fn.T, precision=jax.lax.Precision.HIGHEST) / temperature
    lse = jax.scipy.special.logsumexp(logits, axis=1)
    return jnp.sum(lse - jnp.diagonal(logits))


if __name__ == "__main__":
    k1, k2, k3 = jax.random.split(jax.random.PRNGKey(0), 3)

    # Case 1: correlated features (loss is O(1)) -> meaningful relative check.
    common = jax.random.normal(k1, (1, 128), dtype=jnp.float32)
    f1 = common + 0.3 * jax.random.normal(k2, (8, 128), dtype=jnp.float32)
    out1 = jax.block_until_ready(contrastive_loss(f1, temperature=0.05))
    ref1 = _reference_loss(f1, temperature=0.05)
    assert jnp.allclose(out1, ref1, rtol=2e-2, atol=1e-2), (out1, ref1)

    # Case 2: independent features, non-multiple-of-8 batch, block_rows=8 -> multi-tile
    # grid, in-kernel query slicing, zero-row padding / masking / correction paths.
    f2 = jax.random.normal(k3, (13, 128), dtype=jnp.float32)
    out2 = jax.block_until_ready(contrastive_loss(f2, temperature=0.05, block_rows=8))
    ref2 = _reference_loss(f2, temperature=0.05)
    assert jnp.allclose(out2, ref2, rtol=2e-2, atol=1e-2), (out2, ref2)

    # Case 3: exact path (f32 MXU + f32 exp), tighter tolerance.
    out3 = jax.block_until_ready(
        contrastive_loss(f1, temperature=0.05, use_bf16_matmul=False,
                         use_bf16_exp=False))
    assert jnp.allclose(out3, ref1, rtol=5e-3, atol=1e-3), (out3, ref1)

    print("KERNEL_OK")
</pallas_src>

<mosaic_0001>
module attributes {stable_mosaic.version = 11 : i64} {
  func.func @_contrastive_loss_kernel(%arg0: i32, %arg1: memref<128x128xbf16, #tpu.memory_space<vmem>>, %arg2: memref<1x1xf32, #tpu.memory_space<smem>>) attributes {dimension_semantics = [#tpu.dimension_semantics<parallel>], iteration_bounds = array<i64: 1>, scalar_prefetch = 0 : i64, scratch_operands = 0 : i64, tpu.core_type = #tpu.core_type<tc>, window_params = [{pipeline_mode = #tpu.pipeline_mode<synchronous>, transform_indices = @transform_0, window_bounds = array<i64: 128, 128>}, {transform_indices = @transform_1, window_bounds = array<i64: 1, 1>}]} {
    %c8_i32 = arith.constant 8 : i32
    %0 = arith.muli %arg0, %c8_i32 : i32
    %1 = tpu.assume_multiple %0, 8 : i32
    %c0 = arith.constant 0 : index
    %c0_0 = arith.constant 0 : index
    %2 = vector.load %arg1[%c0, %c0_0] : memref<128x128xbf16, #tpu.memory_space<vmem>>, vector<128x128xbf16>
    %3 = arith.index_cast %1 : i32 to index
    %c0_1 = arith.constant 0 : index
    %4 = vector.load %arg1[%3, %c0_1] : memref<128x128xbf16, #tpu.memory_space<vmem>>, vector<8x128xbf16>
    %cst = arith.constant dense<0.000000e+00> : vector<8x128xf32>
    %5 = tpu.matmul %4, %2, %cst {dimension_numbers = #tpu.dot_dimension_numbers<[1], [1], [0], [0], [0, 0, 1, 0], [], []>} : vector<8x128xbf16>, vector<128x128xbf16>, vector<8x128xf32> -> vector<8x128xf32>
    %6 = arith.extf %4 : vector<8x128xbf16> to vector<8x128xf32>
    %7 = arith.mulf %6, %6 : vector<8x128xf32>
    %cst_2 = arith.constant dense<0.000000e+00> : vector<8xf32>
    %8 = vector.multi_reduction <add>, %7, %cst_2 [1] : vector<8x128xf32> to vector<8xf32>
    %9 = vector.shape_cast %8 : vector<8xf32> to vector<8x1xf32>
    %10 = vector.broadcast %9 : vector<8x1xf32> to vector<8x128xf32>
    %11 = arith.subf %5, %10 : vector<8x128xf32>
    %cst_3 = arith.constant 2.000000e+01 : f32
    %12 = vector.broadcast %cst_3 : f32 to vector<8x128xf32>
    %13 = arith.mulf %11, %12 : vector<8x128xf32>
    %14 = math.exp %13 : vector<8x128xf32>
    %cst_4 = arith.constant dense<0.000000e+00> : vector<8xf32>
    %15 = vector.multi_reduction <add>, %14, %cst_4 [1] : vector<8x128xf32> to vector<8xf32>
    %16 = vector.shape_cast %15 : vector<8xf32> to vector<8x1xf32>
    %cst_5 = arith.constant -2.000000e+01 : f32
    %17 = vector.broadcast %cst_5 : f32 to vector<8x1xf32>
    %18 = arith.mulf %17, %9 : vector<8x1xf32>
    %19 = math.exp %18 : vector<8x1xf32>
    %cst_6 = arith.constant 1.200000e+02 : f32
    %20 = vector.broadcast %cst_6 : f32 to vector<8x1xf32>
    %21 = arith.mulf %20, %19 : vector<8x1xf32>
    %22 = arith.subf %16, %21 : vector<8x1xf32>
    %23 = math.log %22 : vector<8x1xf32>
    %24 = vector.shape_cast %23 : vector<8x1xf32> to vector<1x8x1xf32>
    %cst_7 = arith.constant dense<0.000000e+00> : vector<1xf32>
    %25 = vector.multi_reduction <add>, %24, %cst_7 [1, 2] : vector<1x8x1xf32> to vector<1xf32>
    %26 = vector.shape_cast %25 : vector<1xf32> to vector<1x1x1xf32>
    %27 = vector.extract %26[0, 0, 0] : f32 from vector<1x1x1xf32>
    %c0_8 = arith.constant 0 : index
    %c0_9 = arith.constant 0 : index
    %28 = memref.load %arg2[%c0_8, %c0_9] : memref<1x1xf32, #tpu.memory_space<smem>>
    memref.store %27, %arg2[%c0_8, %c0_9] : memref<1x1xf32, #tpu.memory_space<smem>>
    return
  }
  func.func @transform_0(%arg0: i32) -> (i32, i32) {
    %c0_i32 = arith.constant 0 : i32
    %c0_i32_0 = arith.constant 0 : i32
    %c0_i32_1 = arith.constant 0 : i32
    return %c0_i32, %c0_i32_0 : i32, i32
  }
  func.func @transform_1(%arg0: i32) -> (i32, i32) {
    %c0_i32 = arith.constant 0 : i32
    %c0_i32_0 = arith.constant 0 : i32
    return %arg0, %c0_i32 : i32, i32
  }
}

</mosaic_0001>

<llo_original>
// kernel: tpu_custom_call.1
$region0: #{tpu_custom_call.1}
  #allocation0 [shape = 'u32[]', space=smem, size = 0x4, offset = 0x4, fixed_abs, tag = 'smem constant byte address 0x4 - core index']
  #allocation1 [shape = 'u32[144,128]{1,0:T(1,128)}', space=vmem, size = 0x12000, scoped, tag = 'internal scratch']
  %s0 = inlined_call_operand.hbm [shape: bf16[128,128], index: 0, kind: input, shape index: {}]
  %s1 = inlined_call_operand.hbm [shape: f32[1,1], index: 1, kind: output, shape index: {}]
  %s2 = sld [smem:[#allocation0]]
  $region18: #{tpu_custom_call.1} parent=0
    _
  %s4 = ssub.s32 1, %s2
  %s5 = scalar_select 0, %s4, %s2
  $region1: #{tpu_custom_call.1} parent=0
    #allocation2 [shape = 'u8[32768]{0}', space=vmem, size = 0x8000, scoped, tag = 'input window, operand 0, single buffered']
    #allocation3 [shape = 's32[1]{0}', space=sflag, size = 0x4, scoped, tag = 'scoped memory for tpu_custom_call.1']
    #allocation4 [shape = 's32[1]{0}', space=sflag, size = 0x4, scoped, tag = 'scoped memory for tpu_custom_call.1']
    #allocation5 [shape = 'u8[512]{0}', space=smem, size = 0x200, scoped, tag = 'output window, operand 0, single buffered']
    %6 = vsyncpa [#allocation3], 0
    %7 = vsyncpa [#allocation4], 0
    // Predicated region
    $region2: #{tpu_custom_call.1} parent=1 // pred_check
      _
    $region3: #{tpu_custom_call.1} parent=1 // pred_check_branch
      %9 = sbr.rel (0) target = $region5
    $region4: #{tpu_custom_call.1} parent=1 // pred_region
      %s11 = ssub.s32 1024, 1024
      %12 = vsyncadd [#allocation3], %s11
      %s13 = sshll.u32 [#allocation2], 4
      %s14 = int_to_ptr.vmem [resolvable:$true] %s13
      %19 = dma.hbm_to_vmem [thread:$0]  %s0, 1024, %s14, [#allocation3], 64, 64, 4
    $region5: #{tpu_custom_call.1} parent=1 // pred_fallthru
      _
    // Predicated region
    $region6: #{tpu_custom_call.1} parent=1 // pred_check
      _
    $region7: #{tpu_custom_call.1} parent=1 // pred_check_branch
      %21 = sbr.rel (0) target = $region9
    $region8: #{tpu_custom_call.1} parent=1 // pred_region
      %22 = dma.done [#allocation3], 1024
    $region9: #{tpu_custom_call.1} parent=1 // pred_fallthru
      _
    %s24 = smul.u32 0, 8
    %v25 = vld [vmem:[#allocation2] sm:$0xf]
    %v26 = vld [vmem:[#allocation2 + $0x4] sm:$0xf]
    %v27 = vld [vmem:[#allocation2 + $0x8] sm:$0xf]
    %v28 = vld [vmem:[#allocation2 + $0xc] sm:$0xf]
    %v29 = vld [vmem:[#allocation2 + $0x10] sm:$0xf]
    %v30 = vld [vmem:[#allocation2 + $0x14] sm:$0xf]
    %v31 = vld [vmem:[#allocation2 + $0x18] sm:$0xf]
    %v32 = vld [vmem:[#allocation2 + $0x1c] sm:$0xf]
    %v33 = vld [vmem:[#allocation2 + $0x20] sm:$0xf]
    %v34 = vld [vmem:[#allocation2 + $0x24] sm:$0xf]
    %v35 = vld [vmem:[#allocation2 + $0x28] sm:$0xf]
    %v36 = vld [vmem:[#allocation2 + $0x2c] sm:$0xf]
    %v37 = vld [vmem:[#allocation2 + $0x30] sm:$0xf]
    %v38 = vld [vmem:[#allocation2 + $0x34] sm:$0xf]
    %v39 = vld [vmem:[#allocation2 + $0x38] sm:$0xf]
    %v40 = vld [vmem:[#allocation2 + $0x3c] sm:$0xf]
    %s41 = sshra.s32 %s24, 3
    %s42 = sand.u32 %s24, 7
    %s43 = smul.addr %s41, 4
    %s44 = scalar_lea.vmem [#allocation2], %s43
    %v45 = vld [vmem:[%s44] sm:$0xf]
    %v62 = vunpack.c.l.b16 %v25
    %v63 = vunpack.c.l.b16 %v26
    %v64 = vunpack.c.l.b16 %v27
    %v65 = vunpack.c.l.b16 %v28
    %v66 = vunpack.c.l.b16 %v29
    %v67 = vunpack.c.l.b16 %v30
    %v68 = vunpack.c.l.b16 %v31
    %v69 = vunpack.c.l.b16 %v32
    %v70 = vunpack.c.l.b16 %v33
    %v71 = vunpack.c.l.b16 %v34
    %v72 = vunpack.c.l.b16 %v35
    %v73 = vunpack.c.l.b16 %v36
    %v74 = vunpack.c.l.b16 %v37
    %v75 = vunpack.c.l.b16 %v38
    %v76 = vunpack.c.l.b16 %v39
    %v77 = vunpack.c.l.b16 %v40
    %v78 = vpack.c.b16 %v63, %v62
    %v79 = vpack.c.b16 %v65, %v64
    %v80 = vpack.c.b16 %v67, %v66
    %v81 = vpack.c.b16 %v69, %v68
    %v82 = vpack.c.b16 %v71, %v70
    %v83 = vpack.c.b16 %v73, %v72
    %v84 = vpack.c.b16 %v75, %v74
    %v85 = vpack.c.b16 %v77, %v76
    %94 = vmatprep.subr.bf16.mxu0 0
    %95 = vmatpush1.bf16.xpose.msra.mxu0 %v78
    %96 = vmatprep.subr.bf16.mxu0 0
    %97 = vmatpush1.bf16.xpose.msra.mxu0 %v79
    %98 = vmatprep.subr.bf16.mxu0 0
    %99 = vmatpush1.bf16.xpose.msra.mxu0 %v80
    %100 = vmatprep.subr.bf16.mxu0 0
    %101 = vmatpush1.bf16.xpose.msra.mxu0 %v81
    %102 = vmatprep.subr.bf16.mxu0 0
    %103 = vmatpush1.bf16.xpose.msra.mxu0 %v82
    %104 = vmatprep.subr.bf16.mxu0 0
    %105 = vmatpush1.bf16.xpose.msra.mxu0 %v83
    %106 = vmatprep.subr.bf16.mxu0 0
    %107 = vmatpush1.bf16.xpose.msra.mxu0 %v84
    %108 = vmatprep.subr.bf16.mxu0 0
    %109 = vmatpush1.bf16.xpose.msra.mxu0 %v85
    %110 = vmatprep.subr.bf16.mxu0 0
    %111 = vmatpush1.bf16.xpose.msra.mxu0 0
    %112 = vmatprep.subr.bf16.mxu0 0
    %113 = vmatpush1.bf16.xpose.msra.mxu0 0
    %114 = vmatprep.subr.bf16.mxu0 0
    %115 = vmatpush1.bf16.xpose.msra.mxu0 0
    %116 = vmatprep.subr.bf16.mxu0 0
    %117 = vmatpush1.bf16.xpose.msra.mxu0 0
    %118 = vmatprep.subr.bf16.mxu0 0
    %119 = vmatpush1.bf16.xpose.msra.mxu0 0
    %120 = vmatprep.subr.bf16.mxu0 0
    %121 = vmatpush1.bf16.xpose.msra.mxu0 0
    %122 = vmatprep.subr.bf16.mxu0 0
    %123 = vmatpush1.bf16.xpose.msra.mxu0 0
    %124 = vmatprep.subr.bf16.mxu0 0
    %125 = vmatpush1.bf16.xpose.msra.mxu0 0
    %126 = vmatprep.mubr.bf16.mxu0 0
    %127 = vmatmul.mubr.bf16.gmra.mrb[0].mxu0 %v45
    %v128 = vpop.f32.mrb[0].mxu0
    %v129 = vadd.f32 0.0, %v128
    %v130 = vpop.f32.mrb[0].mxu0
    %v131 = vpop.f32.mrb[0].mxu0
    %v132 = vpop.f32.mrb[0].mxu0
    %133 = vdwg.mxu0
    %v134 = vunpack.c.l.bf16 %v45
    %v135 = vmul.f32 %v134, %v134
    %136 = vadd.xlane.f32.xlu0 %v135
    %v137 = vpop.xlane.xlu0 %136
    %v138 = vsub.f32 %v129, %v137
    %v139 = vmul.f32 %v138, 20.0
    %v140 = vmul.f32 %v139, 1.442695
    %v141 = vpow.pop %v140
    %142 = vadd.xlane.f32.xlu0 %v141
    %v143 = vpop.xlane.xlu0 %142
    %v144 = vmul.f32 %v137, -20.0
    %v145 = vmul.f32 %v144, 1.442695
    %v146 = vpow.pop %v145
    %v147 = vmul.f32 %v146, 120.0
    %v148 = vsub.f32 %v143, %v147
    %v149 = vlog2.pop %v148
    %v150 = vmul.f32 %v149, 0.6931472
    %vm151 = vcmask 7168
    %v152 = vsel %vm151, %v150, 0.0
    %153 = vadd.xlane.f32.xlu0 %v152
    %v154 = vpop.xlane.xlu0 %153
    %v155 = vrot.slane %v154, 4
    %v156 = vadd.f32 %v154, %v155
    %v157 = vrot.slane %v156, 2
    %v158 = vadd.f32 %v156, %v157
    %v159 = vrot.slane %v158, 1
    %v160 = vadd.f32 %v158, %v159
    %s161 = vtos %v160
    %s162 = scalar_lea.smem [#allocation5], 0
    %163 = sst [smem:[%s162]] %s161
    // Predicated region
    $region10: #{tpu_custom_call.1} parent=1 // pred_check
      _
    $region11: #{tpu_custom_call.1} parent=1 // pred_check_branch
      %165 = sbr.rel (0) target = $region13
    $region12: #{tpu_custom_call.1} parent=1 // pred_region
      %s167 = ssub.s32 16, 16
      %168 = vsyncadd [#allocation4], %s167
      %171 = dma.smem_to_hbm [#allocation5], 16, %s1, [#allocation4]
    $region13: #{tpu_custom_call.1} parent=1 // pred_fallthru
      _
    // Predicated region
    $region14: #{tpu_custom_call.1} parent=1 // pred_check
      _
    $region15: #{tpu_custom_call.1} parent=1 // pred_check_branch
      %173 = sbr.rel (0) target = $region17
    $region16: #{tpu_custom_call.1} parent=1 // pred_region
      %174 = dma.done [#allocation4], 16
    $region17: #{tpu_custom_call.1} parent=1 // pred_fallthru
      _
    %175 = sfence
    %176 = vsyncpa [#allocation3], 1
    %177 = vsyncpa [#allocation4], 1

</llo_original>
